<compile_context>
chip_gen: v5e
topology: v5e:2x2
jax: 0.10.0
libtpu: 0.0.40
codegen_flags: <defaults>
</compile_context>

<pallas_src>
import numpy as np
import jax
import jax.numpy as jnp
from jax.experimental import pallas as pl
from jax.experimental.pallas import tpu as pltpu


# Set to jnp.bfloat16 for ~2-3x MXU throughput (matmul inputs only; accumulation
# stays f32).  Kept at f32 by default pending tolerance re-validation.
MXU_COMPUTE_DTYPE = jnp.float32


def _mxu_contract_is_256():
    """True on chips whose MXU contraction is 256 wide (v6e / v7x)."""
    try:
        kind = jax.devices()[0].device_kind.lower()
    except Exception:
        return True
    for tag in ("v2", "v3", "v4", "v5"):
        if tag in kind:
            return False
    return True


def _pick_batch_block(batch):
    """Largest TB dividing batch with batch//TB >= 2 (keep >=2 parallel blocks
    for v7x's two TensorCores); TB = 1 when batch == 1."""
    if batch <= 1:
        return 1
    for tb in range(batch // 2, 0, -1):
        if batch % tb == 0:
            return tb
    return 1


# ----------------------------------------------------------------------------
# Kernels.  Field packed as [Xr | Xi] (.., N, 2N); AR packed as the 2x2
# real-embedding block [[ARr, ARi], [-ARi, ARr]] (2N, 2N).
# ----------------------------------------------------------------------------
def _make_kernel_k256(compute_dtype):
    """Layer step for 256-wide MXUs: two K=2N right-multiplies against AR.

    Uses AL @ X @ AR = scale * ((X @ AR)^T @ AR)^T.  The carried field
    alternates orientation each layer; scale and the parity transpose are
    folded into m_ref on the host.
    """
    def kernel(x_ref, ar_ref, m_ref, o_ref):
        tb, n, n2 = x_ref.shape          # n2 == 2 * n
        layer = pl.program_id(1)

        @pl.when(layer == 0)
        def _():
            o_ref[...] = x_ref[...]       # field enters VMEM once per batch block

        ar = ar_ref[...].astype(compute_dtype)

        # W = X @ AR : one lane-dense (TB*N, 2N) @ (2N, 2N) matmul, K = 2N
        fl = o_ref[...].reshape(tb * n, n2).astype(compute_dtype)
        w = jnp.dot(fl, ar, preferred_element_type=jnp.float32)

        # transpose the (N, N) real/imag halves of each batch element (XLU)
        rows = []
        for b in range(tb):
            wb = w[b * n:(b + 1) * n, :]
            rows.append(jnp.concatenate([wb[:, :n].T, wb[:, n:].T], axis=1))
        wt = rows[0] if tb == 1 else jnp.concatenate(rows, axis=0)

        # V = W^T @ AR : second K = 2N matmul; scale*V == (AL @ X @ AR)^T
        v = jnp.dot(wt.astype(compute_dtype), ar,
                    preferred_element_type=jnp.float32)
        v3 = v.reshape(tb, n, n2)
        vr = v3[..., :n]
        vi = v3[..., n:]

        # per-layer mask (scale and parity transpose pre-folded on the host)
        g = m_ref[layer]                  # (N, 2N), VMEM-resident stack
        gr = g[:, :n]
        gi = g[:, n:]
        o_ref[...] = jnp.concatenate([vr * gr - vi * gi,
                                      vr * gi + vi * gr], axis=-1)
    return kernel


def _make_kernel_k128(compute_dtype):
    """Layer step for 128-wide MXUs (v5e and older): AL @ (X @ AR) form."""
    def kernel(x_ref, al_ref, ar_ref, m_ref, o_ref):
        tb, n, n2 = x_ref.shape
        layer = pl.program_id(1)

        @pl.when(layer == 0)
        def _():
            o_ref[...] = x_ref[...]

        ar = ar_ref[...].astype(compute_dtype)
        al = al_ref[...].astype(compute_dtype)

        # right multiply across the whole batch block (K = 2N)
        fl = o_ref[...].reshape(tb * n, n2).astype(compute_dtype)
        w = jnp.dot(fl, ar, preferred_element_type=jnp.float32)   # (TB*N, 2N)

        g = m_ref[layer]
        mr = g[:, :n]
        mi = g[:, n:]

        # left multiply per batch element (K = N fills a 128x128 MXU)
        for b in range(tb):
            wb = w[b * n:(b + 1) * n, :].astype(compute_dtype)      # (N, 2N)
            t = jnp.dot(al, wb, preferred_element_type=jnp.float32)  # (2N, 2N)
            zr = t[:n, :n] - t[n:, n:]
            zi = t[:n, n:] + t[n:, :n]
            o_ref[b, :, :n] = zr * mr - zi * mi
            o_ref[b, :, n:] = zr * mi + zi * mr
    return kernel


# ----------------------------------------------------------------------------
# pallas_call wrapper
# ----------------------------------------------------------------------------
def fused_diffractive_stack(xh, ar_blk, m_packed, al_stack=None, *,
                            use_k256=True, compute_dtype=jnp.float32,
                            batch_block=None):
    """Run L diffractive layers (shared propagation operator) in ONE kernel.

    xh:        (B, N, 2N) f32 packed field [Xr | Xi]   (donated)
    ar_blk:    (2N, 2N)   f32 real-embedded right operator
    m_packed:  (L, N, 2N) f32 per-layer packed masks
    al_stack:  (2N, N)    f32 stacked left operator (only if use_k256=False)
    """
    B, N, N2 = xh.shape
    L = m_packed.shape[0]
    TB = _pick_batch_block(B) if batch_block is None else batch_block
    assert B % TB == 0
    nb = B // TB

    field_spec = pl.BlockSpec((TB, N, N2), lambda b, l: (b, 0, 0))
    # constant index_map -> the full mask stack is fetched once and stays
    # VMEM-resident; the kernel indexes it with the layer id
    mask_spec = pl.BlockSpec((L, N, N2), lambda b, l: (0, 0, 0))
    ar_spec = pl.BlockSpec((N2, N2), lambda b, l: (0, 0))

    if use_k256:
        kernel = _make_kernel_k256(compute_dtype)
        in_specs = [field_spec, ar_spec, mask_spec]
        operands = (xh, ar_blk, m_packed)
    else:
        kernel = _make_kernel_k128(compute_dtype)
        al_spec = pl.BlockSpec((N2, N), lambda b, l: (0, 0))
        in_specs = [field_spec, al_spec, ar_spec, mask_spec]
        operands = (xh, al_stack, ar_blk, m_packed)

    flops = 4 * B * L * N * N2 * N2                 # two real-embedded matmuls/layer
    bytes_accessed = (2 * xh.size + m_packed.size + ar_blk.size) * 4

    return pl.pallas_call(
        kernel,
        grid=(nb, L),
        in_specs=in_specs,
        out_specs=field_spec,
        out_shape=jax.ShapeDtypeStruct((B, N, N2), jnp.float32),
        input_output_aliases={0: 0},                # donate the packed field
        compiler_params=pltpu.CompilerParams(
            dimension_semantics=("parallel", "arbitrary")),
        cost_estimate=pl.CostEstimate(flops=flops, transcendentals=0,
                                      bytes_accessed=bytes_accessed),
    )(*operands)


# ----------------------------------------------------------------------------
# JAX mirrors of the PyTorch modules (parameter setup is host-side glue).
# ----------------------------------------------------------------------------
class DiffractiveLayerRawNode:
    """Mirror of DiffractiveLayerRawNode; stage='common' path = basicOp(x)."""

    def __init__(self, key, wavelength=5.32e-07, pixel_size=3.6e-05, size=128,
                 pad=0, distance=0.1, amplitude_factor=6.0, approx='Fresnel',
                 phase_mod=True, task_list=('basic',)):
        assert approx == 'Fresnel'
        N = size + 2 * pad
        self.N = N
        self.amplitude_factor = float(amplitude_factor)
        self.phase_mod = phase_mod
        self.prop_key = (float(wavelength), float(pixel_size), int(size),
                         int(pad), float(distance), approx)

        # learnable phase parameter, deterministic init in [0, 2*pi)
        self.phase = jax.random.uniform(key, (N, N), jnp.float32,
                                        0.0, 2.0 * np.pi)

        # ---- host precompute (float64) of the propagation operators --------
        # Fresnel transfer fn is separable: H[u,v] = exp(ikd) * a[u] * a[v], so
        #   ifft2(fft2(X) * H) == AL @ X @ AR
        # with AL = scale * conj(F) diag(a) F, AR = F diag(a) conj(F),
        # scale = exp(ikd)/N^2, and (F symmetric) AL^T == scale * AR.
        fx = np.fft.fftfreq(N, d=pixel_size)
        a = np.exp(-1j * np.pi * wavelength * distance *
                   fx.astype(np.float64) ** 2)
        k = 2.0 * np.pi / wavelength
        idx = np.arange(N)
        km = (np.outer(idx, idx) % N).astype(np.float64)
        F = np.exp((-2.0j * np.pi / N) * km)
        Fc = np.conj(F)
        self.scale_c = np.exp(1j * k * distance) / (N * N)
        AR = (F * a[None, :]) @ Fc
        AL = self.scale_c * (Fc * a[None, :]) @ F

        self.ar_blk = jnp.asarray(
            np.block([[AR.real, AR.imag],
                      [-AR.imag, AR.real]]).astype(np.float32))              # (2N, 2N)
        self.al_stack = jnp.asarray(
            np.concatenate([AL.real, AL.imag], axis=0).astype(np.float32))   # (2N, N)

        # full H kept only for the pure-JAX reference
        fxx, fyy = np.meshgrid(fx, fx, indexing='ij')
        phase_h = k * distance - np.pi * wavelength * distance * (fxx ** 2 + fyy ** 2)
        self._h_complex = jnp.asarray(np.exp(1j * phase_h).astype(np.complex64))

        # phase-modulation mask (complex, un-scaled): amplitude * exp(i*phase)
        phase_np = np.asarray(self.phase, dtype=np.float64)
        if phase_mod:
            self.mask_complex_np = self.amplitude_factor * np.exp(1j * phase_np)
        else:
            self.mask_complex_np = np.ones((N, N), dtype=np.complex128)

        # TODO(synk): gumbel-softmax 'mtl'/'specific'/'downsample' branches need
        # stochastic policy sampling + per-task deepcopies; only 'common' is done.

    def __call__(self, xr, xi, stage='common', task=None, tau=5, hard=False):
        if stage != 'common':
            raise NotImplementedError("only stage='common' is implemented")
        return apply_diffractive_stack([self], xr, xi)

    def reference(self, xc):
        """Pure-JAX (jnp.fft) reference for one layer, complex64 in/out."""
        prop = jnp.fft.ifft2(jnp.fft.fft2(xc) * self._h_complex)
        mask = jnp.asarray(self.mask_complex_np.astype(np.complex64))
        return prop * mask


def apply_diffractive_stack(layers, xr, xi):
    """Apply a homogeneous DiffractiveLayerRawNode stack in one fused kernel."""
    first = layers[0]
    N = first.N
    L = len(layers)
    use_k256 = _mxu_contract_is_256()
    xh = jnp.concatenate([xr, xi], axis=-1).astype(jnp.float32)

    if use_k256:
        # Fold exp(ikd)/N^2 exactly once per layer into the mask; even-index
        # layers (true-orientation input) carry a transposed field out, so
        # their masks are transposed on the host.
        masks = []
        for j, m in enumerate(layers):
            g = first.scale_c * m.mask_complex_np
            if j % 2 == 0:
                g = g.T
            masks.append(np.concatenate([g.real, g.imag], axis=1))
        m_packed = jnp.asarray(np.stack(masks, axis=0).astype(np.float32))
        oh = fused_diffractive_stack(xh, first.ar_blk, m_packed,
                                     use_k256=True,
                                     compute_dtype=MXU_COMPUTE_DTYPE)
        out_r, out_i = oh[..., :N], oh[..., N:]
        if L % 2 == 1:   # odd depth -> final carried field is transposed
            out_r = jnp.swapaxes(out_r, -1, -2)
            out_i = jnp.swapaxes(out_i, -1, -2)
    else:
        masks = [np.concatenate([m.mask_complex_np.real,
                                 m.mask_complex_np.imag], axis=1)
                 for m in layers]
        m_packed = jnp.asarray(np.stack(masks, axis=0).astype(np.float32))
        oh = fused_diffractive_stack(xh, first.ar_blk, m_packed,
                                     al_stack=first.al_stack, use_k256=False,
                                     compute_dtype=MXU_COMPUTE_DTYPE)
        out_r, out_i = oh[..., :N], oh[..., N:]
    return out_r, out_i


class ModuleList:
    """Mirror of the PyTorch ModuleList wrapper: apply layers sequentially.

    If every layer is a DiffractiveLayerRawNode sharing the same propagation
    operator, the whole stack runs as ONE fused Pallas kernel.
    """

    def __init__(self, lst):
        self.models = list(lst)

    def __call__(self, x, stage='common', task=None, tau=5, hard=False,
                 policy_idx=None):
        if stage != 'common':
            raise NotImplementedError("only stage='common' is implemented")

        all_diffr = bool(self.models) and all(
            isinstance(m, DiffractiveLayerRawNode) for m in self.models)
        if all_diffr and len({m.prop_key for m in self.models}) == 1:
            xr, xi = x
            return apply_diffractive_stack(self.models, xr, xi)

        # fallback: sequential per-layer application (heterogeneous stacks)
        for layer in self.models:
            if isinstance(layer, DiffractiveLayerRawNode):
                x = layer(x[0], x[1], stage=stage, task=task, tau=tau, hard=hard)
            else:
                x = layer(x)
        return x

    def reference(self, xc):
        for layer in self.models:
            xc = layer.reference(xc)
        return xc


# ----------------------------------------------------------------------------
if __name__ == "__main__":
    B, SIZE = 2, 128

    root = jax.random.PRNGKey(0)
    k_in_r, k_in_i, k0, k1, k2 = jax.random.split(root, 5)

    layers = [DiffractiveLayerRawNode(k, size=SIZE) for k in (k0, k1, k2)]

    xr = jax.random.normal(k_in_r, (B, SIZE, SIZE), jnp.float32)
    xi = jax.random.normal(k_in_i, (B, SIZE, SIZE), jnp.float32)
    xc = (xr + 1j * xi).astype(jnp.complex64)

    def check(model):
        out_r, out_i = model((xr, xi), stage='common')
        out_r = jax.block_until_ready(out_r)
        out_i = jax.block_until_ready(out_i)
        ref = model.reference(xc)
        ref_r, ref_i = np.asarray(ref.real), np.asarray(ref.imag)
        scale = max(np.max(np.abs(ref_r)), np.max(np.abs(ref_i)), 1.0)
        err = max(np.max(np.abs(np.asarray(out_r) - ref_r)),
                  np.max(np.abs(np.asarray(out_i) - ref_i))) / scale
        assert err < 5e-3, f"mismatch vs jnp.fft reference: rel err {err}"

    check(ModuleList(layers[:2]))   # even depth
    check(ModuleList(layers))       # odd depth (exercises the final un-transpose)

    print("KERNEL_OK")
</pallas_src>

<mosaic_0001>
module attributes {stable_mosaic.version = 11 : i64} {
  func.func @kernel(%arg0: i32, %arg1: i32, %arg2: memref<1x128x256xf32, #tpu.memory_space<vmem>>, %arg3: memref<256x256xf32, #tpu.memory_space<vmem>>, %arg4: memref<2x128x256xf32, #tpu.memory_space<vmem>>, %arg5: memref<1x128x256xf32, #tpu.memory_space<vmem>>) attributes {dimension_semantics = [#tpu.dimension_semantics<parallel>, #tpu.dimension_semantics<arbitrary>], iteration_bounds = array<i64: 2, 2>, scalar_prefetch = 0 : i64, scratch_operands = 0 : i64, tpu.core_type = #tpu.core_type<tc>, window_params = [{transform_indices = @transform_0, window_bounds = array<i64: 1, 128, 256>}, {pipeline_mode = #tpu.pipeline_mode<synchronous>, transform_indices = @transform_1, window_bounds = array<i64: 256, 256>}, {pipeline_mode = #tpu.pipeline_mode<synchronous>, transform_indices = @transform_2, window_bounds = array<i64: 2, 128, 256>}, {transform_indices = @transform_3, window_bounds = array<i64: 1, 128, 256>}]} {
    %c0_i32 = arith.constant 0 : i32
    %0 = arith.cmpi eq, %arg1, %c0_i32 : i32
    %1 = arith.extui %0 : i1 to i32
    %c0_i32_0 = arith.constant 0 : i32
    %2 = arith.cmpi ne, %1, %c0_i32_0 : i32
    scf.if %2 {
      %c0_11 = arith.constant 0 : index
      %c0_12 = arith.constant 0 : index
      %c0_13 = arith.constant 0 : index
      %33 = vector.load %arg2[%c0_11, %c0_12, %c0_13] : memref<1x128x256xf32, #tpu.memory_space<vmem>>, vector<1x128x256xf32>
      %c0_14 = arith.constant 0 : index
      %c0_15 = arith.constant 0 : index
      %c0_16 = arith.constant 0 : index
      %34 = vector.load %arg5[%c0_14, %c0_15, %c0_16] : memref<1x128x256xf32, #tpu.memory_space<vmem>>, vector<1x128x256xf32>
      tpu.vector_store %arg5[%c0_14, %c0_15, %c0_16], %33 {strides = array<i32>} : memref<1x128x256xf32, #tpu.memory_space<vmem>>, vector<1x128x256xf32>,
    } else {
    }
    %c0 = arith.constant 0 : index
    %c0_1 = arith.constant 0 : index
    %3 = vector.load %arg3[%c0, %c0_1] : memref<256x256xf32, #tpu.memory_space<vmem>>, vector<256x256xf32>
    %c0_2 = arith.constant 0 : index
    %c0_3 = arith.constant 0 : index
    %c0_4 = arith.constant 0 : index
    %4 = vector.load %arg5[%c0_2, %c0_3, %c0_4] : memref<1x128x256xf32, #tpu.memory_space<vmem>>, vector<1x128x256xf32>
    %5 = vector.shape_cast %4 : vector<1x128x256xf32> to vector<128x256xf32>
    %cst = arith.constant dense<0.000000e+00> : vector<128x256xf32>
    %6 = tpu.matmul %5, %3, %cst {dimension_numbers = #tpu.dot_dimension_numbers<[1], [0], [0], [1], [0, 0, 1, 1], [], []>} : vector<128x256xf32>, vector<256x256xf32>, vector<128x256xf32> -> vector<128x256xf32>
    %7 = vector.extract_strided_slice %6 {offsets = [0, 0], sizes = [128, 128], strides = [1, 1]} : vector<128x256xf32> to vector<128x128xf32>
    %8 = tpu.transpose %7, [1, 0] : vector<128x128xf32> -> vector<128x128xf32>
    %9 = vector.extract_strided_slice %6 {offsets = [0, 128], sizes = [128, 128], strides = [1, 1]} : vector<128x256xf32> to vector<128x128xf32>
    %10 = tpu.transpose %9, [1, 0] : vector<128x128xf32> -> vector<128x128xf32>
    %11 = tpu.concatenate %8, %10 in 1 : vector<128x128xf32>, vector<128x128xf32> -> vector<128x256xf32>
    %cst_5 = arith.constant dense<0.000000e+00> : vector<128x256xf32>
    %12 = tpu.matmul %11, %3, %cst_5 {dimension_numbers = #tpu.dot_dimension_numbers<[1], [0], [0], [1], [0, 0, 1, 1], [], []>} : vector<128x256xf32>, vector<256x256xf32>, vector<128x256xf32> -> vector<128x256xf32>
    %13 = vector.shape_cast %12 : vector<128x256xf32> to vector<1x128x256xf32>
    %14 = vector.extract_strided_slice %13 {offsets = [0, 0, 0], sizes = [1, 128, 128], strides = [1, 1, 1]} : vector<1x128x256xf32> to vector<1x128x128xf32>
    %15 = vector.extract_strided_slice %13 {offsets = [0, 0, 128], sizes = [1, 128, 128], strides = [1, 1, 1]} : vector<1x128x256xf32> to vector<1x128x128xf32>
    %16 = arith.index_cast %arg1 : i32 to index
    %c0_6 = arith.constant 0 : index
    %c0_7 = arith.constant 0 : index
    %17 = vector.load %arg4[%16, %c0_6, %c0_7] : memref<2x128x256xf32, #tpu.memory_space<vmem>>, vector<1x128x256xf32>
    %18 = vector.shape_cast %17 : vector<1x128x256xf32> to vector<128x256xf32>
    %19 = vector.extract_strided_slice %18 {offsets = [0, 0], sizes = [128, 128], strides = [1, 1]} : vector<128x256xf32> to vector<128x128xf32>
    %20 = vector.extract_strided_slice %18 {offsets = [0, 128], sizes = [128, 128], strides = [1, 1]} : vector<128x256xf32> to vector<128x128xf32>
    %21 = vector.shape_cast %19 : vector<128x128xf32> to vector<1x128x128xf32>
    %22 = arith.mulf %14, %21 : vector<1x128x128xf32>
    %23 = vector.shape_cast %20 : vector<128x128xf32> to vector<1x128x128xf32>
    %24 = arith.mulf %15, %23 : vector<1x128x128xf32>
    %25 = arith.subf %22, %24 : vector<1x128x128xf32>
    %26 = vector.shape_cast %20 : vector<128x128xf32> to vector<1x128x128xf32>
    %27 = arith.mulf %14, %26 : vector<1x128x128xf32>
    %28 = vector.shape_cast %19 : vector<128x128xf32> to vector<1x128x128xf32>
    %29 = arith.mulf %15, %28 : vector<1x128x128xf32>
    %30 = arith.addf %27, %29 : vector<1x128x128xf32>
    %31 = tpu.concatenate %25, %30 in 2 : vector<1x128x128xf32>, vector<1x128x128xf32> -> vector<1x128x256xf32>
    %c0_8 = arith.constant 0 : index
    %c0_9 = arith.constant 0 : index
    %c0_10 = arith.constant 0 : index
    %32 = vector.load %arg5[%c0_8, %c0_9, %c0_10] : memref<1x128x256xf32, #tpu.memory_space<vmem>>, vector<1x128x256xf32>
    tpu.vector_store %arg5[%c0_8, %c0_9, %c0_10], %31 {strides = array<i32>} : memref<1x128x256xf32, #tpu.memory_space<vmem>>, vector<1x128x256xf32>,
    return
  }
  func.func @transform_0(%arg0: i32, %arg1: i32) -> (i32, i32, i32) {
    %c0_i32 = arith.constant 0 : i32
    %c0_i32_0 = arith.constant 0 : i32
    %c0_i32_1 = arith.constant 0 : i32
    return %arg0, %c0_i32, %c0_i32_0 : i32, i32, i32
  }
  func.func @transform_1(%arg0: i32, %arg1: i32) -> (i32, i32) {
    %c0_i32 = arith.constant 0 : i32
    %c0_i32_0 = arith.constant 0 : i32
    %c0_i32_1 = arith.constant 0 : i32
    return %c0_i32, %c0_i32_0 : i32, i32
  }
  func.func @transform_2(%arg0: i32, %arg1: i32) -> (i32, i32, i32) {
    %c0_i32 = arith.constant 0 : i32
    %c0_i32_0 = arith.constant 0 : i32
    %c0_i32_1 = arith.constant 0 : i32
    %c0_i32_2 = arith.constant 0 : i32
    return %c0_i32, %c0_i32_0, %c0_i32_1 : i32, i32, i32
  }
  func.func @transform_3(%arg0: i32, %arg1: i32) -> (i32, i32, i32) {
    %c0_i32 = arith.constant 0 : i32
    %c0_i32_0 = arith.constant 0 : i32
    %c0_i32_1 = arith.constant 0 : i32
    return %arg0, %c0_i32, %c0_i32_0 : i32, i32, i32
  }
}

</mosaic_0001>

<llo_original>
// kernel: tpu_custom_call.1
$region0: #{tpu_custom_call.1}
  #allocation0 [shape = 'u32[]', space=smem, size = 0x4, offset = 0x4, fixed_abs, tag = 'smem constant byte address 0x4 - core index']
  #allocation1 [shape = 'u32[72,128]{1,0:T(1,128)}', space=vmem, size = 0x9000, scoped, tag = 'internal scratch']
  %s0 = inlined_call_operand.hbm [shape: f32[2,128,256], index: 0, kind: input, shape index: {}, may-alias: {0,3}]
  %s1 = inlined_call_operand.vmem [shape: f32[256,256], index: 1, kind: input, shape index: {}]
  %s2 = inlined_call_operand.vmem [shape: f32[2,128,256], index: 2, kind: input, shape index: {}]
  %s3 = inlined_call_operand.hbm [shape: f32[2,128,256], index: 3, kind: output, shape index: {}, may-alias: {0,3}]
  %s4 = sld [smem:[#allocation0]]
  $region53: #{tpu_custom_call.1} parent=0
    _
  %s6 = ssub.s32 1, %s4
  %s7 = scalar_select 0, %s6, %s4
  $region1: #{tpu_custom_call.1} parent=0
    #allocation2 [shape = 'u8[262144]{0}', space=vmem, size = 0x40000, scoped, tag = 'input window, operand 0']
    #allocation3 [shape = 's32[2]{0}', space=sflag, size = 0x8, scoped, tag = 'scoped memory for tpu_custom_call.1']
    #allocation4 [shape = 's32[2]{0}', space=sflag, size = 0x8, scoped, tag = 'scoped memory for tpu_custom_call.1']
    #allocation5 [shape = 'u8[262144]{0}', space=vmem, size = 0x40000, scoped, tag = 'output window, operand 0']
    %8 = vsyncpa [#allocation3], 0
    %s9 = scalar_lea.sflag [#allocation3], 1
    %10 = vsyncpa %s9, 0
    %11 = vsyncpa [#allocation4], 0
    %s12 = scalar_lea.sflag [#allocation4], 1
    %13 = vsyncpa %s12, 0
    loop: start=0, step=1, limit=6
    $region2: #{tpu_custom_call.1} parent=1 // loop_pre_header
      _
    $region3: #{tpu_custom_call.1} parent=1 // loop_header
      %s15 = sphi 0, %s19
      %p16 = scmp.ge.s32.totalorder %s15, 6
      %s22 = sphi 0, %s34
      %s23 = sphi 0, %s30
      %s24 = sphi 0, %s22
      %s25 = sphi 0, %s23
      %s26 = sphi 0, %s24
      %s27 = sphi 0, %s25
      %s37 = sphi 0, %s39
      %s40 = sphi 0, %s37
      %s41 = sphi 0, %s40
      %s57 = sphi 0, %s41
      %s61 = sphi 0, %s61
      %s63 = sphi 0, %s61
      %s64 = sphi 0, %s63
      %s78 = sphi 0, %s64
      %s82 = sphi 0, %s82
      %s84 = sphi 0, %s82
      %s85 = sphi 0, %s84
      %s99 = sphi 0, %s85
      %s105 = sphi 0, %s107
      %s108 = sphi 0, %s105
      %s109 = sphi 0, %s108
      %s125 = sphi 0, %s109
    $region4: #{tpu_custom_call.1} parent=1 // loop_header_branch
      %18 = sbr.rel (%p16) target = $region8
    $region5: #{tpu_custom_call.1} parent=1 // loop_body
      %s20 = ssub.s32 %s15, 1
      %s21 = ssub.s32 %s15, 2
      %s28 = sadd.s32 1, %s23
      %p29 = scmp.ge.s32.totalorder %s28, 2
      %s30 = scalar_select %p29, 0, %s28
      %s31 = sadd.s32 1, %s22
      %s32 = scalar_select %p29, %s31, %s22
      %p33 = scmp.ge.s32.totalorder %s32, 2
      %s34 = scalar_select %p33, 0, %s32
      %s35 = ssub.s32 %s22, %s34
      %p36 = scmp.eq.s32.totalorder %s35, 0
      %s38 = sadd.s32 %s37, 1
      %s39 = scalar_select %p36, %s37, %s38
      %p42 = pneg %p36
      %p43 = scmp.eq.s32.totalorder %s15, 3
      %p44 = por %p42, %p43
      %p45 = scmp.ne.s32.totalorder %s37, %s40
      %p46 = scmp.eq.s32.totalorder %s15, 0
      %p47 = por %p45, %p46
      %p48 = scmp.ne.s32.totalorder %s37, %s40
      %p49 = scmp.eq.s32.totalorder %s20, 3
      %p50 = por %p48, %p49
      %p51 = scmp.ne.s32.totalorder %s40, %s41
      %p52 = scmp.eq.s32.totalorder %s20, 0
      %p53 = por %p51, %p52
      %p54 = scmp.ne.s32.totalorder %s40, %s41
      %p55 = scmp.eq.s32.totalorder %s21, 3
      %p56 = por %p54, %p55
      %p58 = scmp.ne.s32.totalorder %s41, %s57
      %p59 = scmp.eq.s32.totalorder %s21, 0
      %p60 = por %p58, %p59
      %s62 = sadd.s32 %s61, 1
      %p65 = scmp.eq.s32.totalorder %s15, 3
      %p66 = scmp.ne.s32.totalorder %s61, %s63
      %p67 = scmp.eq.s32.totalorder %s15, 0
      %p68 = por %p66, %p67
      %p69 = scmp.ne.s32.totalorder %s61, %s63
      %p70 = scmp.eq.s32.totalorder %s20, 3
      %p71 = por %p69, %p70
      %p72 = scmp.ne.s32.totalorder %s63, %s64
      %p73 = scmp.eq.s32.totalorder %s20, 0
      %p74 = por %p72, %p73
      %p75 = scmp.ne.s32.totalorder %s63, %s64
      %p76 = scmp.eq.s32.totalorder %s21, 3
      %p77 = por %p75, %p76
      %p79 = scmp.ne.s32.totalorder %s64, %s78
      %p80 = scmp.eq.s32.totalorder %s21, 0
      %p81 = por %p79, %p80
      %s83 = sadd.s32 %s82, 1
      %p86 = scmp.eq.s32.totalorder %s15, 3
      %p87 = scmp.ne.s32.totalorder %s82, %s84
      %p88 = scmp.eq.s32.totalorder %s15, 0
      %p89 = por %p87, %p88
      %p90 = scmp.ne.s32.totalorder %s82, %s84
      %p91 = scmp.eq.s32.totalorder %s20, 3
      %p92 = por %p90, %p91
      %p93 = scmp.ne.s32.totalorder %s84, %s85
      %p94 = scmp.eq.s32.totalorder %s20, 0
      %p95 = por %p93, %p94
      %p96 = scmp.ne.s32.totalorder %s84, %s85
      %p97 = scmp.eq.s32.totalorder %s21, 3
      %p98 = por %p96, %p97
      %p100 = scmp.ne.s32.totalorder %s85, %s99
      %p101 = scmp.eq.s32.totalorder %s21, 0
      %p102 = por %p100, %p101
      %s103 = ssub.s32 %s22, %s34
      %p104 = scmp.eq.s32.totalorder %s103, 0
      %s106 = sadd.s32 %s105, 1
      %s107 = scalar_select %p104, %s105, %s106
      %p110 = pneg %p104
      %p111 = scmp.eq.s32.totalorder %s15, 3
      %p112 = por %p110, %p111
      %p113 = scmp.ne.s32.totalorder %s105, %s108
      %p114 = scmp.eq.s32.totalorder %s15, 0
      %p115 = por %p113, %p114
      %p116 = scmp.ne.s32.totalorder %s105, %s108
      %p117 = scmp.eq.s32.totalorder %s20, 3
      %p118 = por %p116, %p117
      %p119 = scmp.ne.s32.totalorder %s108, %s109
      %p120 = scmp.eq.s32.totalorder %s20, 0
      %p121 = por %p119, %p120
      %p122 = scmp.ne.s32.totalorder %s108, %s109
      %p123 = scmp.eq.s32.totalorder %s21, 3
      %p124 = por %p122, %p123
      %p126 = scmp.ne.s32.totalorder %s109, %s125
      %p127 = scmp.eq.s32.totalorder %s21, 0
      %p128 = por %p126, %p127
      %p129 = scmp.le.s32.totalorder 1, %s15
      %p130 = scmp.lt.s32.totalorder %s15, 5
      %p131 = pnand %p129, %p130
      %p132 = pneg %p131
      // Predicated region
      $region9: #{tpu_custom_call.1} parent=5 // pred_check
        _
      $region10: #{tpu_custom_call.1} parent=5 // pred_check_branch
        %134 = sbr.rel (%p131) target = $region12
      $region11: #{tpu_custom_call.1} parent=5 // pred_region
        %s135 = ssub.s32 %s15, 1
        // Predicated region
        $region13: #{tpu_custom_call.1} parent=11 // pred_check
          %p136 = pneg %p74
        $region14: #{tpu_custom_call.1} parent=11 // pred_check_branch
          %138 = sbr.rel (%p136) target = $region16
        $region15: #{tpu_custom_call.1} parent=11 // pred_region
          _
        $region16: #{tpu_custom_call.1} parent=11 // pred_fallthru
          _
        // Predicated region
        $region17: #{tpu_custom_call.1} parent=11 // pred_check
          %p139 = pneg %p95
        $region18: #{tpu_custom_call.1} parent=11 // pred_check_branch
          %141 = sbr.rel (%p139) target = $region20
        $region19: #{tpu_custom_call.1} parent=11 // pred_region
          _
        $region20: #{tpu_custom_call.1} parent=11 // pred_fallthru
          _
      $region12: #{tpu_custom_call.1} parent=5 // pred_fallthru
        _
      %p142 = scmp.lt.s32.totalorder %s15, 4
      // Predicated region
      $region21: #{tpu_custom_call.1} parent=5 // pred_check
        %p143 = pneg %p142
      $region22: #{tpu_custom_call.1} parent=5 // pred_check_branch
        %145 = sbr.rel (%p143) target = $region24
      $region23: #{tpu_custom_call.1} parent=5 // pred_region
        // Predicated region
        $region25: #{tpu_custom_call.1} parent=23 // pred_check
          %p146 = pneg %p47
        $region26: #{tpu_custom_call.1} parent=23 // pred_check_branch
          %148 = sbr.rel (%p146) target = $region28
        $region27: #{tpu_custom_call.1} parent=23 // pred_region
          %s149 = sand.u32 %s37, 1
          %s150 = scalar_lea.sflag [#allocation3], %s149
          %s151 = sand.u32 %s37, 1
          %s152 = smul.addr %s151, 256
          %s153 = scalar_lea.vmem [#allocation2], %s152
          %155 = vsyncadd %s150, 0
          %s156 = smul.addr %s22, 32
          %s157 = smul.addr %s156, 8
          %s158 = scalar_lea.hbm %s0, %s157
          %s159 = sshll.u32 %s158, 4
          %s160 = int_to_ptr.hbm [resolvable:$true] %s159
          %s161 = sshll.u32 %s153, 4
          %s162 = int_to_ptr.vmem [resolvable:$true] %s161
          %167 = dma.hbm_to_vmem [thread:$0]  %s160, 4096, %s162, %s150, 256, 256, 16
        $region28: #{tpu_custom_call.1} parent=23 // pred_fallthru
          _
      $region24: #{tpu_custom_call.1} parent=5 // pred_fallthru
        _
      %p168 = scmp.le.s32.totalorder 1, %s15
      %p169 = scmp.lt.s32.totalorder %s15, 5
      %p170 = pnand %p168, %p169
      %p171 = pneg %p170
      // Predicated region
      $region29: #{tpu_custom_call.1} parent=5 // pred_check
        _
      $region30: #{tpu_custom_call.1} parent=5 // pred_check_branch
        %173 = sbr.rel (%p170) target = $region32
      $region31: #{tpu_custom_call.1} parent=5 // pred_region
        %s174 = ssub.s32 %s15, 1
        %s175 = sand.u32 %s40, 1
        %s176 = scalar_lea.sflag [#allocation3], %s175
        %s177 = sand.u32 %s40, 1
        %s178 = smul.addr %s177, 256
        %s179 = scalar_lea.vmem [#allocation2], %s178
        // Predicated region
        $region33: #{tpu_custom_call.1} parent=31 // pred_check
          %p180 = pneg %p53
        $region34: #{tpu_custom_call.1} parent=31 // pred_check_branch
          %182 = sbr.rel (%p180) target = $region36
        $region35: #{tpu_custom_call.1} parent=31 // pred_region
          %184 = dma.done %s176, 4096
        $region36: #{tpu_custom_call.1} parent=31 // pred_fallthru
          _
        %s185 = sand.u32 %s40, 1
        %s186 = scalar_lea.sflag [#allocation3], %s185
        %s187 = sand.u32 %s40, 1
        %s188 = smul.addr %s187, 256
        %s189 = scalar_lea.vmem [#allocation2], %s188
        %p190 = pneg %p53
        %p191 = pneg %p50
        %p192 = pneg %p74
        %p193 = pneg %p71
        %p194 = pneg %p95
        %p195 = pneg %p92
        %p196 = pneg %p121
        %p197 = pneg %p118
        %s198 = sand.u32 %s108, 1
        %s199 = scalar_lea.sflag [#allocation4], %s198
        %s200 = sand.u32 %s108, 1
        %s201 = smul.addr %s200, 256
        %s202 = scalar_lea.vmem [#allocation5], %s201
        %p203 = scmp.eq.s32.totalorder %s25, 0
        // Predicated region
        $region37: #{tpu_custom_call.1} parent=31 // pred_check
          %p204 = pneg %p203
        $region38: #{tpu_custom_call.1} parent=31 // pred_check_branch
          %206 = sbr.rel (%p204) target = $region40
        $region39: #{tpu_custom_call.1} parent=31 // pred_region
          %v207 = vld [vmem:[%s179] sm:$0xff]
          %v208 = vld [vmem:[%s179 + $0x8] sm:$0xff]
          %v209 = vld [vmem:[%s179 + $0x10] sm:$0xff]
          %v210 = vld [vmem:[%s179 + $0x18] sm:$0xff]
          %v211 = vld [vmem:[%s179 + $0x20] sm:$0xff]
          %v212 = vld [vmem:[%s179 + $0x28] sm:$0xff]
          %v213 = vld [vmem:[%s179 + $0x30] sm:$0xff]
          %v214 = vld [vmem:[%s179 + $0x38] sm:$0xff]
          %v215 = vld [vmem:[%s179 + $0x40] sm:$0xff]
          %v216 = vld [vmem:[%s179 + $0x48] sm:$0xff]
          %v217 = vld [vmem:[%s179 + $0x50] sm:$0xff]
          %v218 = vld [vmem:[%s179 + $0x58] sm:$0xff]
          %v219 = vld [vmem:[%s179 + $0x60] sm:$0xff]
          %v220 = vld [vmem:[%s179 + $0x68] sm:$0xff]
          %v221 = vld [vmem:[%s179 + $0x70] sm:$0xff]
          %v222 = vld [vmem:[%s179 + $0x78] sm:$0xff]
          %v223 = vld [vmem:[%s179 + $0x80] sm:$0xff]
          %v224 = vld [vmem:[%s179 + $0x88] sm:$0xff]
          %v225 = vld [vmem:[%s179 + $0x90] sm:$0xff]
          %v226 = vld [vmem:[%s179 + $0x98] sm:$0xff]
          %v227 = vld [vmem:[%s179 + $0xa0] sm:$0xff]
          %v228 = vld [vmem:[%s179 + $0xa8] sm:$0xff]
          %v229 = vld [vmem:[%s179 + $0xb0] sm:$0xff]
          %v230 = vld [vmem:[%s179 + $0xb8] sm:$0xff]
          %v231 = vld [vmem:[%s179 + $0xc0] sm:$0xff]
          %v232 = vld [vmem:[%s179 + $0xc8] sm:$0xff]
          %v233 = vld [vmem:[%s179 + $0xd0] sm:$0xff]
          %v234 = vld [vmem:[%s179 + $0xd8] sm:$0xff]
          %v235 = vld [vmem:[%s179 + $0xe0] sm:$0xff]
          %v236 = vld [vmem:[%s179 + $0xe8] sm:$0xff]
          %v237 = vld [vmem:[%s179 + $0xf0] sm:$0xff]
          %v238 = vld [vmem:[%s179 + $0xf8] sm:$0xff]
          %239 = vst [vmem:[%s202] sm:$0xff] %v207
          %240 = vst [vmem:[%s202 + $0x8] sm:$0xff] %v208
          %241 = vst [vmem:[%s202 + $0x10] sm:$0xff] %v209
          %242 = vst [vmem:[%s202 + $0x18] sm:$0xff] %v210
          %243 = vst [vmem:[%s202 + $0x20] sm:$0xff] %v211
          %244 = vst [vmem:[%s202 + $0x28] sm:$0xff] %v212
          %245 = vst [vmem:[%s202 + $0x30] sm:$0xff] %v213
          %246 = vst [vmem:[%s202 + $0x38] sm:$0xff] %v214
          %247 = vst [vmem:[%s202 + $0x40] sm:$0xff] %v215
          %248 = vst [vmem:[%s202 + $0x48] sm:$0xff] %v216
          %249 = vst [vmem:[%s202 + $0x50] sm:$0xff] %v217
          %250 = vst [vmem:[%s202 + $0x58] sm:$0xff] %v218
          %251 = vst [vmem:[%s202 + $0x60] sm:$0xff] %v219
          %252 = vst [vmem:[%s202 + $0x68] sm:$0xff] %v220
          %253 = vst [vmem:[%s202 + $0x70] sm:$0xff] %v221
          %254 = vst [vmem:[%s202 + $0x78] sm:$0xff] %v222
          %255 = vst [vmem:[%s202 + $0x80] sm:$0xff] %v223
          %256 = vst [vmem:[%s202 + $0x88] sm:$0xff] %v224
          %257 = vst [vmem:[%s202 + $0x90] sm:$0xff] %v225
          %258 = vst [vmem:[%s202 + $0x98] sm:$0xff] %v226
          %259 = vst [vmem:[%s202 + $0xa0] sm:$0xff] %v227
          %260 = vst [vmem:[%s202 + $0xa8] sm:$0xff] %v228
          %261 = vst [vmem:[%s202 + $0xb0] sm:$0xff] %v229
          %262 = vst [vmem:[%s202 + $0xb8] sm:$0xff] %v230
          %263 = vst [vmem:[%s202 + $0xc0] sm:$0xff] %v231
          %264 = vst [vmem:[%s202 + $0xc8] sm:$0xff] %v232
          %265 = vst [vmem:[%s202 + $0xd0] sm:$0xff] %v233
          %266 = vst [vmem:[%s202 + $0xd8] sm:$0xff] %v234
          %267 = vst [vmem:[%s202 + $0xe0] sm:$0xff] %v235
          %268 = vst [vmem:[%s202 + $0xe8] sm:$0xff] %v236
          %269 = vst [vmem:[%s202 + $0xf0] sm:$0xff] %v237
          %270 = vst [vmem:[%s202 + $0xf8] sm:$0xff] %v238
        $region40: #{tpu_custom_call.1} parent=31 // pred_fallthru
          _
        %v271 = vld [vmem:[%s1] sm:$0xff]
        %v272 = vld [vmem:[%s1 + $0x8] sm:$0xff]
        %v273 = vld [vmem:[%s1 + $0x10] sm:$0xff]
        %v274 = vld [vmem:[%s1 + $0x18] sm:$0xff]
        %v275 = vld [vmem:[%s1 + $0x20] sm:$0xff]
        %v276 = vld [vmem:[%s1 + $0x28] sm:$0xff]
        %v277 = vld [vmem:[%s1 + $0x30] sm:$0xff]
        %v278 = vld [vmem:[%s1 + $0x38] sm:$0xff]
        %v279 = vld [vmem:[%s1 + $0x40] sm:$0xff]
        %v280 = vld [vmem:[%s1 + $0x48] sm:$0xff]
        %v281 = vld [vmem:[%s1 + $0x50] sm:$0xff]
        %v282 = vld [vmem:[%s1 + $0x58] sm:$0xff]
        %v283 = vld [vmem:[%s1 + $0x60] sm:$0xff]
        %v284 = vld [vmem:[%s1 + $0x68] sm:$0xff]
        %v285 = vld [vmem:[%s1 + $0x70] sm:$0xff]
        %v286 = vld [vmem:[%s1 + $0x78] sm:$0xff]
        %v287 = vld [vmem:[%s1 + $0x80] sm:$0xff]
        %v288 = vld [vmem:[%s1 + $0x88] sm:$0xff]
        %v289 = vld [vmem:[%s1 + $0x90] sm:$0xff]
        %v290 = vld [vmem:[%s1 + $0x98] sm:$0xff]
        %v291 = vld [vmem:[%s1 + $0xa0] sm:$0xff]
        %v292 = vld [vmem:[%s1 + $0xa8] sm:$0xff]
        %v293 = vld [vmem:[%s1 + $0xb0] sm:$0xff]
        %v294 = vld [vmem:[%s1 + $0xb8] sm:$0xff]
        %v295 = vld [vmem:[%s1 + $0xc0] sm:$0xff]
        %v296 = vld [vmem:[%s1 + $0xc8] sm:$0xff]
        %v297 = vld [vmem:[%s1 + $0xd0] sm:$0xff]
        %v298 = vld [vmem:[%s1 + $0xd8] sm:$0xff]
        %v299 = vld [vmem:[%s1 + $0xe0] sm:$0xff]
        %v300 = vld [vmem:[%s1 + $0xe8] sm:$0xff]
        %v301 = vld [vmem:[%s1 + $0xf0] sm:$0xff]
        %v302 = vld [vmem:[%s1 + $0xf8] sm:$0xff]
        %v303 = vld [vmem:[%s1 + $0x100] sm:$0xff]
        %v304 = vld [vmem:[%s1 + $0x108] sm:$0xff]
        %v305 = vld [vmem:[%s1 + $0x110] sm:$0xff]
        %v306 = vld [vmem:[%s1 + $0x118] sm:$0xff]
        %v307 = vld [vmem:[%s1 + $0x120] sm:$0xff]
        %v308 = vld [vmem:[%s1 + $0x128] sm:$0xff]
        %v309 = vld [vmem:[%s1 + $0x130] sm:$0xff]
        %v310 = vld [vmem:[%s1 + $0x138] sm:$0xff]
        %v311 = vld [vmem:[%s1 + $0x140] sm:$0xff]
        %v312 = vld [vmem:[%s1 + $0x148] sm:$0xff]
        %v313 = vld [vmem:[%s1 + $0x150] sm:$0xff]
        %v314 = vld [vmem:[%s1 + $0x158] sm:$0xff]
        %v315 = vld [vmem:[%s1 + $0x160] sm:$0xff]
        %v316 = vld [vmem:[%s1 + $0x168] sm:$0xff]
        %v317 = vld [vmem:[%s1 + $0x170] sm:$0xff]
        %v318 = vld [vmem:[%s1 + $0x178] sm:$0xff]
        %v319 = vld [vmem:[%s1 + $0x180] sm:$0xff]
        %v320 = vld [vmem:[%s1 + $0x188] sm:$0xff]
        %v321 = vld [vmem:[%s1 + $0x190] sm:$0xff]
        %v322 = vld [vmem:[%s1 + $0x198] sm:$0xff]
        %v323 = vld [vmem:[%s1 + $0x1a0] sm:$0xff]
        %v324 = vld [vmem:[%s1 + $0x1a8] sm:$0xff]
        %v325 = vld [vmem:[%s1 + $0x1b0] sm:$0xff]
        %v326 = vld [vmem:[%s1 + $0x1b8] sm:$0xff]
        %v327 = vld [vmem:[%s1 + $0x1c0] sm:$0xff]
        %v328 = vld [vmem:[%s1 + $0x1c8] sm:$0xff]
        %v329 = vld [vmem:[%s1 + $0x1d0] sm:$0xff]
        %v330 = vld [vmem:[%s1 + $0x1d8] sm:$0xff]
        %v331 = vld [vmem:[%s1 + $0x1e0] sm:$0xff]
        %v332 = vld [vmem:[%s1 + $0x1e8] sm:$0xff]
        %v333 = vld [vmem:[%s1 + $0x1f0] sm:$0xff]
        %v334 = vld [vmem:[%s1 + $0x1f8] sm:$0xff]
        %v335 = vld [vmem:[%s202] sm:$0xff]
        %v336 = vld [vmem:[%s202 + $0x8] sm:$0xff]
        %v337 = vld [vmem:[%s202 + $0x10] sm:$0xff]
        %v338 = vld [vmem:[%s202 + $0x18] sm:$0xff]
        %v339 = vld [vmem:[%s202 + $0x20] sm:$0xff]
        %v340 = vld [vmem:[%s202 + $0x28] sm:$0xff]
        %v341 = vld [vmem:[%s202 + $0x30] sm:$0xff]
        %v342 = vld [vmem:[%s202 + $0x38] sm:$0xff]
        %v343 = vld [vmem:[%s202 + $0x40] sm:$0xff]
        %v344 = vld [vmem:[%s202 + $0x48] sm:$0xff]
        %v345 = vld [vmem:[%s202 + $0x50] sm:$0xff]
        %v346 = vld [vmem:[%s202 + $0x58] sm:$0xff]
        %v347 = vld [vmem:[%s202 + $0x60] sm:$0xff]
        %v348 = vld [vmem:[%s202 + $0x68] sm:$0xff]
        %v349 = vld [vmem:[%s202 + $0x70] sm:$0xff]
        %v350 = vld [vmem:[%s202 + $0x78] sm:$0xff]
        %v351 = vld [vmem:[%s202 + $0x80] sm:$0xff]
        %v352 = vld [vmem:[%s202 + $0x88] sm:$0xff]
        %v353 = vld [vmem:[%s202 + $0x90] sm:$0xff]
        %v354 = vld [vmem:[%s202 + $0x98] sm:$0xff]
        %v355 = vld [vmem:[%s202 + $0xa0] sm:$0xff]
        %v356 = vld [vmem:[%s202 + $0xa8] sm:$0xff]
        %v357 = vld [vmem:[%s202 + $0xb0] sm:$0xff]
        %v358 = vld [vmem:[%s202 + $0xb8] sm:$0xff]
        %v359 = vld [vmem:[%s202 + $0xc0] sm:$0xff]
        %v360 = vld [vmem:[%s202 + $0xc8] sm:$0xff]
        %v361 = vld [vmem:[%s202 + $0xd0] sm:$0xff]
        %v362 = vld [vmem:[%s202 + $0xd8] sm:$0xff]
        %v363 = vld [vmem:[%s202 + $0xe0] sm:$0xff]
        %v364 = vld [vmem:[%s202 + $0xe8] sm:$0xff]
        %v365 = vld [vmem:[%s202 + $0xf0] sm:$0xff]
        %v366 = vld [vmem:[%s202 + $0xf8] sm:$0xff]
        %367 = vmatpush.msra.mxu0 %v301
        %368 = vmatpush.msra.mxu0 %v299
        %369 = vmatpush.msra.mxu0 %v297
        %370 = vmatpush.msra.mxu0 %v295
        %371 = vmatpush.msra.mxu0 %v293
        %372 = vmatpush.msra.mxu0 %v291
        %373 = vmatpush.msra.mxu0 %v289
        %374 = vmatpush.msra.mxu0 %v287
        %375 = vmatpush.msra.mxu0 %v285
        %376 = vmatpush.msra.mxu0 %v283
        %377 = vmatpush.msra.mxu0 %v281
        %378 = vmatpush.msra.mxu0 %v279
        %379 = vmatpush.msra.mxu0 %v277
        %380 = vmatpush.msra.mxu0 %v275
        %381 = vmatpush.msra.mxu0 %v273
        %382 = vmatpush.msra.mxu0 %v271
        %383 = vmatmul.f32.gmra.mxu0 %v335
        %v384 = vpop.f32.mrf.mxu0
        %v385 = vadd.f32 0.0, %v384
        %386 = vmatmul.f32.gmra.mxu0 %v337
        %v387 = vpop.f32.mrf.mxu0
        %v388 = vadd.f32 0.0, %v387
        %389 = vmatmul.f32.gmra.mxu0 %v339
        %v390 = vpop.f32.mrf.mxu0
        %v391 = vadd.f32 0.0, %v390
        %392 = vmatmul.f32.gmra.mxu0 %v341
        %v393 = vpop.f32.mrf.mxu0
        %v394 = vadd.f32 0.0, %v393
        %395 = vmatmul.f32.gmra.mxu0 %v343
        %v396 = vpop.f32.mrf.mxu0
        %v397 = vadd.f32 0.0, %v396
        %398 = vmatmul.f32.gmra.mxu0 %v345
        %v399 = vpop.f32.mrf.mxu0
        %v400 = vadd.f32 0.0, %v399
        %401 = vmatmul.f32.gmra.mxu0 %v347
        %v402 = vpop.f32.mrf.mxu0
        %v403 = vadd.f32 0.0, %v402
        %404 = vmatmul.f32.gmra.mxu0 %v349
        %v405 = vpop.f32.mrf.mxu0
        %v406 = vadd.f32 0.0, %v405
        %407 = vmatmul.f32.gmra.mxu0 %v351
        %v408 = vpop.f32.mrf.mxu0
        %v409 = vadd.f32 0.0, %v408
        %410 = vmatmul.f32.gmra.mxu0 %v353
        %v411 = vpop.f32.mrf.mxu0
        %v412 = vadd.f32 0.0, %v411
        %413 = vmatmul.f32.gmra.mxu0 %v355
        %v414 = vpop.f32.mrf.mxu0
        %v415 = vadd.f32 0.0, %v414
        %416 = vmatmul.f32.gmra.mxu0 %v357
        %v417 = vpop.f32.mrf.mxu0
        %v418 = vadd.f32 0.0, %v417
        %419 = vmatmul.f32.gmra.mxu0 %v359
        %v420 = vpop.f32.mrf.mxu0
        %v421 = vadd.f32 0.0, %v420
        %422 = vmatmul.f32.gmra.mxu0 %v361
        %v423 = vpop.f32.mrf.mxu0
        %v424 = vadd.f32 0.0, %v423
        %425 = vmatmul.f32.gmra.mxu0 %v363
        %v426 = vpop.f32.mrf.mxu0
        %v427 = vadd.f32 0.0, %v426
        %428 = vmatmul.f32.gmra.mxu0 %v365
        %v429 = vpop.f32.mrf.mxu0
        %v430 = vadd.f32 0.0, %v429
        %431 = vdwg.mxu0
        %432 = vmatpush.msra.mxu0 %v333
        %433 = vmatpush.msra.mxu0 %v331
        %434 = vmatpush.msra.mxu0 %v329
        %435 = vmatpush.msra.mxu0 %v327
        %436 = vmatpush.msra.mxu0 %v325
        %437 = vmatpush.msra.mxu0 %v323
        %438 = vmatpush.msra.mxu0 %v321
        %439 = vmatpush.msra.mxu0 %v319
        %440 = vmatpush.msra.mxu0 %v317
        %441 = vmatpush.msra.mxu0 %v315
        %442 = vmatpush.msra.mxu0 %v313
        %443 = vmatpush.msra.mxu0 %v311
        %444 = vmatpush.msra.mxu0 %v309
        %445 = vmatpush.msra.mxu0 %v307
        %446 = vmatpush.msra.mxu0 %v305
        %447 = vmatpush.msra.mxu0 %v303
        %448 = vmatmul.f32.gmra.mxu0 %v336
        %v449 = vpop.f32.mrf.mxu0
        %v450 = vadd.f32 %v385, %v449
        %451 = vmatmul.f32.gmra.mxu0 %v338
        %v452 = vpop.f32.mrf.mxu0
        %v453 = vadd.f32 %v388, %v452
        %454 = vmatmul.f32.gmra.mxu0 %v340
        %v455 = vpop.f32.mrf.mxu0
        %v456 = vadd.f32 %v391, %v455
        %457 = vmatmul.f32.gmra.mxu0 %v342
        %v458 = vpop.f32.mrf.mxu0
        %v459 = vadd.f32 %v394, %v458
        %460 = vmatmul.f32.gmra.mxu0 %v344
        %v461 = vpop.f32.mrf.mxu0
        %v462 = vadd.f32 %v397, %v461
        %463 = vmatmul.f32.gmra.mxu0 %v346
        %v464 = vpop.f32.mrf.mxu0
        %v465 = vadd.f32 %v400, %v464
        %466 = vmatmul.f32.gmra.mxu0 %v348
        %v467 = vpop.f32.mrf.mxu0
        %v468 = vadd.f32 %v403, %v467
        %469 = vmatmul.f32.gmra.mxu0 %v350
        %v470 = vpop.f32.mrf.mxu0
        %v471 = vadd.f32 %v406, %v470
        %472 = vmatmul.f32.gmra.mxu0 %v352
        %v473 = vpop.f32.mrf.mxu0
        %v474 = vadd.f32 %v409, %v473
        %475 = vmatmul.f32.gmra.mxu0 %v354
        %v476 = vpop.f32.mrf.mxu0
        %v477 = vadd.f32 %v412, %v476
        %478 = vmatmul.f32.gmra.mxu0 %v356
        %v479 = vpop.f32.mrf.mxu0
        %v480 = vadd.f32 %v415, %v479
        %481 = vmatmul.f32.gmra.mxu0 %v358
        %v482 = vpop.f32.mrf.mxu0
        %v483 = vadd.f32 %v418, %v482
        %484 = vmatmul.f32.gmra.mxu0 %v360
        %v485 = vpop.f32.mrf.mxu0
        %v486 = vadd.f32 %v421, %v485
        %487 = vmatmul.f32.gmra.mxu0 %v362
        %v488 = vpop.f32.mrf.mxu0
        %v489 = vadd.f32 %v424, %v488
        %490 = vmatmul.f32.gmra.mxu0 %v364
        %v491 = vpop.f32.mrf.mxu0
        %v492 = vadd.f32 %v427, %v491
        %493 = vmatmul.f32.gmra.mxu0 %v366
        %v494 = vpop.f32.mrf.mxu0
        %v495 = vadd.f32 %v430, %v494
        %496 = vdwg.mxu0
        %497 = vmatpush.msra.mxu0 %v302
        %498 = vmatpush.msra.mxu0 %v300
        %499 = vmatpush.msra.mxu0 %v298
        %500 = vmatpush.msra.mxu0 %v296
        %501 = vmatpush.msra.mxu0 %v294
        %502 = vmatpush.msra.mxu0 %v292
        %503 = vmatpush.msra.mxu0 %v290
        %504 = vmatpush.msra.mxu0 %v288
        %505 = vmatpush.msra.mxu0 %v286
        %506 = vmatpush.msra.mxu0 %v284
        %507 = vmatpush.msra.mxu0 %v282
        %508 = vmatpush.msra.mxu0 %v280
        %509 = vmatpush.msra.mxu0 %v278
        %510 = vmatpush.msra.mxu0 %v276
        %511 = vmatpush.msra.mxu0 %v274
        %512 = vmatpush.msra.mxu0 %v272
        %513 = vmatmul.f32.gmra.mxu0 %v335
        %v514 = vpop.f32.mrf.mxu0
        %v515 = vadd.f32 0.0, %v514
        %516 = vmatmul.f32.gmra.mxu0 %v337
        %v517 = vpop.f32.mrf.mxu0
        %v518 = vadd.f32 0.0, %v517
        %519 = vmatmul.f32.gmra.mxu0 %v339
        %v520 = vpop.f32.mrf.mxu0
        %v521 = vadd.f32 0.0, %v520
        %522 = vmatmul.f32.gmra.mxu0 %v341
        %v523 = vpop.f32.mrf.mxu0
        %v524 = vadd.f32 0.0, %v523
        %525 = vmatmul.f32.gmra.mxu0 %v343
        %v526 = vpop.f32.mrf.mxu0
        %v527 = vadd.f32 0.0, %v526
        %528 = vmatmul.f32.gmra.mxu0 %v345
        %v529 = vpop.f32.mrf.mxu0
        %v530 = vadd.f32 0.0, %v529
        %531 = vmatmul.f32.gmra.mxu0 %v347
        %v532 = vpop.f32.mrf.mxu0
        %v533 = vadd.f32 0.0, %v532
        %534 = vmatmul.f32.gmra.mxu0 %v349
        %v535 = vpop.f32.mrf.mxu0
        %v536 = vadd.f32 0.0, %v535
        %537 = vmatmul.f32.gmra.mxu0 %v351
        %v538 = vpop.f32.mrf.mxu0
        %v539 = vadd.f32 0.0, %v538
        %540 = vmatmul.f32.gmra.mxu0 %v353
        %v541 = vpop.f32.mrf.mxu0
        %v542 = vadd.f32 0.0, %v541
        %543 = vmatmul.f32.gmra.mxu0 %v355
        %v544 = vpop.f32.mrf.mxu0
        %v545 = vadd.f32 0.0, %v544
        %546 = vmatmul.f32.gmra.mxu0 %v357
        %v547 = vpop.f32.mrf.mxu0
        %v548 = vadd.f32 0.0, %v547
        %549 = vmatmul.f32.gmra.mxu0 %v359
        %v550 = vpop.f32.mrf.mxu0
        %v551 = vadd.f32 0.0, %v550
        %552 = vmatmul.f32.gmra.mxu0 %v361
        %v553 = vpop.f32.mrf.mxu0
        %v554 = vadd.f32 0.0, %v553
        %555 = vmatmul.f32.gmra.mxu0 %v363
        %v556 = vpop.f32.mrf.mxu0
        %v557 = vadd.f32 0.0, %v556
        %558 = vmatmul.f32.gmra.mxu0 %v365
        %v559 = vpop.f32.mrf.mxu0
        %v560 = vadd.f32 0.0, %v559
        %561 = vdwg.mxu0
        %562 = vmatpush.msra.mxu0 %v334
        %563 = vmatpush.msra.mxu0 %v332
        %564 = vmatpush.msra.mxu0 %v330
        %565 = vmatpush.msra.mxu0 %v328
        %566 = vmatpush.msra.mxu0 %v326
        %567 = vmatpush.msra.mxu0 %v324
        %568 = vmatpush.msra.mxu0 %v322
        %569 = vmatpush.msra.mxu0 %v320
        %570 = vmatpush.msra.mxu0 %v318
        %571 = vmatpush.msra.mxu0 %v316
        %572 = vmatpush.msra.mxu0 %v314
        %573 = vmatpush.msra.mxu0 %v312
        %574 = vmatpush.msra.mxu0 %v310
        %575 = vmatpush.msra.mxu0 %v308
        %576 = vmatpush.msra.mxu0 %v306
        %577 = vmatpush.msra.mxu0 %v304
        %578 = vmatmul.f32.gmra.mxu0 %v336
        %v579 = vpop.f32.mrf.mxu0
        %v580 = vadd.f32 %v515, %v579
        %581 = vmatmul.f32.gmra.mxu0 %v338
        %v582 = vpop.f32.mrf.mxu0
        %v583 = vadd.f32 %v518, %v582
        %584 = vmatmul.f32.gmra.mxu0 %v340
        %v585 = vpop.f32.mrf.mxu0
        %v586 = vadd.f32 %v521, %v585
        %587 = vmatmul.f32.gmra.mxu0 %v342
        %v588 = vpop.f32.mrf.mxu0
        %v589 = vadd.f32 %v524, %v588
        %590 = vmatmul.f32.gmra.mxu0 %v344
        %v591 = vpop.f32.mrf.mxu0
        %v592 = vadd.f32 %v527, %v591
        %593 = vmatmul.f32.gmra.mxu0 %v346
        %v594 = vpop.f32.mrf.mxu0
        %v595 = vadd.f32 %v530, %v594
        %596 = vmatmul.f32.gmra.mxu0 %v348
        %v597 = vpop.f32.mrf.mxu0
        %v598 = vadd.f32 %v533, %v597
        %599 = vmatmul.f32.gmra.mxu0 %v350
        %v600 = vpop.f32.mrf.mxu0
        %v601 = vadd.f32 %v536, %v600
        %602 = vmatmul.f32.gmra.mxu0 %v352
        %v603 = vpop.f32.mrf.mxu0
        %v604 = vadd.f32 %v539, %v603
        %605 = vmatmul.f32.gmra.mxu0 %v354
        %v606 = vpop.f32.mrf.mxu0
        %v607 = vadd.f32 %v542, %v606
        %608 = vmatmul.f32.gmra.mxu0 %v356
        %v609 = vpop.f32.mrf.mxu0
        %v610 = vadd.f32 %v545, %v609
        %611 = vmatmul.f32.gmra.mxu0 %v358
        %v612 = vpop.f32.mrf.mxu0
        %v613 = vadd.f32 %v548, %v612
        %614 = vmatmul.f32.gmra.mxu0 %v360
        %v615 = vpop.f32.mrf.mxu0
        %v616 = vadd.f32 %v551, %v615
        %617 = vmatmul.f32.gmra.mxu0 %v362
        %v618 = vpop.f32.mrf.mxu0
        %v619 = vadd.f32 %v554, %v618
        %620 = vmatmul.f32.gmra.mxu0 %v364
        %v621 = vpop.f32.mrf.mxu0
        %v622 = vadd.f32 %v557, %v621
        %623 = vmatmul.f32.gmra.mxu0 %v366
        %v624 = vpop.f32.mrf.mxu0
        %v625 = vadd.f32 %v560, %v624
        %626 = vdwg.mxu0
        %627 = vxpose.xlu0.b32.start [1/16] %v450, 128
        %628 = vxpose.xlu0.b32.cont [2/16] %v453, 128
        %629 = vxpose.xlu0.b32.cont [3/16] %v456, 128
        %630 = vxpose.xlu0.b32.cont [4/16] %v459, 128
        %631 = vxpose.xlu0.b32.cont [5/16] %v462, 128
        %632 = vxpose.xlu0.b32.cont [6/16] %v465, 128
        %633 = vxpose.xlu0.b32.cont [7/16] %v468, 128
        %634 = vxpose.xlu0.b32.cont [8/16] %v471, 128
        %635 = vxpose.xlu0.b32.cont [9/16] %v474, 128
        %636 = vxpose.xlu0.b32.cont [10/16] %v477, 128
        %637 = vxpose.xlu0.b32.cont [11/16] %v480, 128
        %638 = vxpose.xlu0.b32.cont [12/16] %v483, 128
        %639 = vxpose.xlu0.b32.cont [13/16] %v486, 128
        %640 = vxpose.xlu0.b32.cont [14/16] %v489, 128
        %641 = vxpose.xlu0.b32.cont [15/16] %v492, 128
        %642 = vxpose.xlu0.b32.end [16/16] %v495, 128
        %v643 = vpop.trf.xlu0
        %v644 = vpop.trf.xlu0
        %v645 = vpop.trf.xlu0
        %v646 = vpop.trf.xlu0
        %v647 = vpop.trf.xlu0
        %v648 = vpop.trf.xlu0
        %v649 = vpop.trf.xlu0
        %v650 = vpop.trf.xlu0
        %v651 = vpop.trf.xlu0
        %v652 = vpop.trf.xlu0
        %v653 = vpop.trf.xlu0
        %v654 = vpop.trf.xlu0
        %v655 = vpop.trf.xlu0
        %v656 = vpop.trf.xlu0
        %v657 = vpop.trf.xlu0
        %v658 = vpop.trf.xlu0
        %659 = vxpose.xlu0.b32.start [1/16] %v580, 128
        %660 = vxpose.xlu0.b32.cont [2/16] %v583, 128
        %661 = vxpose.xlu0.b32.cont [3/16] %v586, 128
        %662 = vxpose.xlu0.b32.cont [4/16] %v589, 128
        %663 = vxpose.xlu0.b32.cont [5/16] %v592, 128
        %664 = vxpose.xlu0.b32.cont [6/16] %v595, 128
        %665 = vxpose.xlu0.b32.cont [7/16] %v598, 128
        %666 = vxpose.xlu0.b32.cont [8/16] %v601, 128
        %667 = vxpose.xlu0.b32.cont [9/16] %v604, 128
        %668 = vxpose.xlu0.b32.cont [10/16] %v607, 128
        %669 = vxpose.xlu0.b32.cont [11/16] %v610, 128
        %670 = vxpose.xlu0.b32.cont [12/16] %v613, 128
        %671 = vxpose.xlu0.b32.cont [13/16] %v616, 128
        %672 = vxpose.xlu0.b32.cont [14/16] %v619, 128
        %673 = vxpose.xlu0.b32.cont [15/16] %v622, 128
        %674 = vxpose.xlu0.b32.end [16/16] %v625, 128
        %v675 = vpop.trf.xlu0
        %v676 = vpop.trf.xlu0
        %v677 = vpop.trf.xlu0
        %v678 = vpop.trf.xlu0
        %v679 = vpop.trf.xlu0
        %v680 = vpop.trf.xlu0
        %v681 = vpop.trf.xlu0
        %v682 = vpop.trf.xlu0
        %v683 = vpop.trf.xlu0
        %v684 = vpop.trf.xlu0
        %v685 = vpop.trf.xlu0
        %v686 = vpop.trf.xlu0
        %v687 = vpop.trf.xlu0
        %v688 = vpop.trf.xlu0
        %v689 = vpop.trf.xlu0
        %v690 = vpop.trf.xlu0
        %691 = vmatpush.msra.mxu0 %v301
        %692 = vmatpush.msra.mxu0 %v299
        %693 = vmatpush.msra.mxu0 %v297
        %694 = vmatpush.msra.mxu0 %v295
        %695 = vmatpush.msra.mxu0 %v293
        %696 = vmatpush.msra.mxu0 %v291
        %697 = vmatpush.msra.mxu0 %v289
        %698 = vmatpush.msra.mxu0 %v287
        %699 = vmatpush.msra.mxu0 %v285
        %700 = vmatpush.msra.mxu0 %v283
        %701 = vmatpush.msra.mxu0 %v281
        %702 = vmatpush.msra.mxu0 %v279
        %703 = vmatpush.msra.mxu0 %v277
        %704 = vmatpush.msra.mxu0 %v275
        %705 = vmatpush.msra.mxu0 %v273
        %706 = vmatpush.msra.mxu0 %v271
        %707 = vmatmul.f32.gmra.mxu0 %v643
        %v708 = vpop.f32.mrf.mxu0
        %v709 = vadd.f32 0.0, %v708
        %710 = vmatmul.f32.gmra.mxu0 %v644
        %v711 = vpop.f32.mrf.mxu0
        %v712 = vadd.f32 0.0, %v711
        %713 = vmatmul.f32.gmra.mxu0 %v645
        %v714 = vpop.f32.mrf.mxu0
        %v715 = vadd.f32 0.0, %v714
        %716 = vmatmul.f32.gmra.mxu0 %v646
        %v717 = vpop.f32.mrf.mxu0
        %v718 = vadd.f32 0.0, %v717
        %719 = vmatmul.f32.gmra.mxu0 %v647
        %v720 = vpop.f32.mrf.mxu0
        %v721 = vadd.f32 0.0, %v720
        %722 = vmatmul.f32.gmra.mxu0 %v648
        %v723 = vpop.f32.mrf.mxu0
        %v724 = vadd.f32 0.0, %v723
        %725 = vmatmul.f32.gmra.mxu0 %v649
        %v726 = vpop.f32.mrf.mxu0
        %v727 = vadd.f32 0.0, %v726
        %728 = vmatmul.f32.gmra.mxu0 %v650
        %v729 = vpop.f32.mrf.mxu0
        %v730 = vadd.f32 0.0, %v729
        %731 = vmatmul.f32.gmra.mxu0 %v651
        %v732 = vpop.f32.mrf.mxu0
        %v733 = vadd.f32 0.0, %v732
        %734 = vmatmul.f32.gmra.mxu0 %v652
        %v735 = vpop.f32.mrf.mxu0
        %v736 = vadd.f32 0.0, %v735
        %737 = vmatmul.f32.gmra.mxu0 %v653
        %v738 = vpop.f32.mrf.mxu0
        %v739 = vadd.f32 0.0, %v738
        %740 = vmatmul.f32.gmra.mxu0 %v654
        %v741 = vpop.f32.mrf.mxu0
        %v742 = vadd.f32 0.0, %v741
        %743 = vmatmul.f32.gmra.mxu0 %v655
        %v744 = vpop.f32.mrf.mxu0
        %v745 = vadd.f32 0.0, %v744
        %746 = vmatmul.f32.gmra.mxu0 %v656
        %v747 = vpop.f32.mrf.mxu0
        %v748 = vadd.f32 0.0, %v747
        %749 = vmatmul.f32.gmra.mxu0 %v657
        %v750 = vpop.f32.mrf.mxu0
        %v751 = vadd.f32 0.0, %v750
        %752 = vmatmul.f32.gmra.mxu0 %v658
        %v753 = vpop.f32.mrf.mxu0
        %v754 = vadd.f32 0.0, %v753
        %755 = vdwg.mxu0
        %756 = vmatpush.msra.mxu0 %v333
        %757 = vmatpush.msra.mxu0 %v331
        %758 = vmatpush.msra.mxu0 %v329
        %759 = vmatpush.msra.mxu0 %v327
        %760 = vmatpush.msra.mxu0 %v325
        %761 = vmatpush.msra.mxu0 %v323
        %762 = vmatpush.msra.mxu0 %v321
        %763 = vmatpush.msra.mxu0 %v319
        %764 = vmatpush.msra.mxu0 %v317
        %765 = vmatpush.msra.mxu0 %v315
        %766 = vmatpush.msra.mxu0 %v313
        %767 = vmatpush.msra.mxu0 %v311
        %768 = vmatpush.msra.mxu0 %v309
        %769 = vmatpush.msra.mxu0 %v307
        %770 = vmatpush.msra.mxu0 %v305
        %771 = vmatpush.msra.mxu0 %v303
        %772 = vmatmul.f32.gmra.mxu0 %v675
        %v773 = vpop.f32.mrf.mxu0
        %v774 = vadd.f32 %v709, %v773
        %775 = vmatmul.f32.gmra.mxu0 %v676
        %v776 = vpop.f32.mrf.mxu0
        %v777 = vadd.f32 %v712, %v776
        %778 = vmatmul.f32.gmra.mxu0 %v677
        %v779 = vpop.f32.mrf.mxu0
        %v780 = vadd.f32 %v715, %v779
        %781 = vmatmul.f32.gmra.mxu0 %v678
        %v782 = vpop.f32.mrf.mxu0
        %v783 = vadd.f32 %v718, %v782
        %784 = vmatmul.f32.gmra.mxu0 %v679
        %v785 = vpop.f32.mrf.mxu0
        %v786 = vadd.f32 %v721, %v785
        %787 = vmatmul.f32.gmra.mxu0 %v680
        %v788 = vpop.f32.mrf.mxu0
        %v789 = vadd.f32 %v724, %v788
        %790 = vmatmul.f32.gmra.mxu0 %v681
        %v791 = vpop.f32.mrf.mxu0
        %v792 = vadd.f32 %v727, %v791
        %793 = vmatmul.f32.gmra.mxu0 %v682
        %v794 = vpop.f32.mrf.mxu0
        %v795 = vadd.f32 %v730, %v794
        %796 = vmatmul.f32.gmra.mxu0 %v683
        %v797 = vpop.f32.mrf.mxu0
        %v798 = vadd.f32 %v733, %v797
        %799 = vmatmul.f32.gmra.mxu0 %v684
        %v800 = vpop.f32.mrf.mxu0
        %v801 = vadd.f32 %v736, %v800
        %802 = vmatmul.f32.gmra.mxu0 %v685
        %v803 = vpop.f32.mrf.mxu0
        %v804 = vadd.f32 %v739, %v803
        %805 = vmatmul.f32.gmra.mxu0 %v686
        %v806 = vpop.f32.mrf.mxu0
        %v807 = vadd.f32 %v742, %v806
        %808 = vmatmul.f32.gmra.mxu0 %v687
        %v809 = vpop.f32.mrf.mxu0
        %v810 = vadd.f32 %v745, %v809
        %811 = vmatmul.f32.gmra.mxu0 %v688
        %v812 = vpop.f32.mrf.mxu0
        %v813 = vadd.f32 %v748, %v812
        %814 = vmatmul.f32.gmra.mxu0 %v689
        %v815 = vpop.f32.mrf.mxu0
        %v816 = vadd.f32 %v751, %v815
        %817 = vmatmul.f32.gmra.mxu0 %v690
        %v818 = vpop.f32.mrf.mxu0
        %v819 = vadd.f32 %v754, %v818
        %820 = vdwg.mxu0
        %821 = vmatpush.msra.mxu0 %v302
        %822 = vmatpush.msra.mxu0 %v300
        %823 = vmatpush.msra.mxu0 %v298
        %824 = vmatpush.msra.mxu0 %v296
        %825 = vmatpush.msra.mxu0 %v294
        %826 = vmatpush.msra.mxu0 %v292
        %827 = vmatpush.msra.mxu0 %v290
        %828 = vmatpush.msra.mxu0 %v288
        %829 = vmatpush.msra.mxu0 %v286
        %830 = vmatpush.msra.mxu0 %v284
        %831 = vmatpush.msra.mxu0 %v282
        %832 = vmatpush.msra.mxu0 %v280
        %833 = vmatpush.msra.mxu0 %v278
        %834 = vmatpush.msra.mxu0 %v276
        %835 = vmatpush.msra.mxu0 %v274
        %836 = vmatpush.msra.mxu0 %v272
        %837 = vmatmul.f32.gmra.mxu0 %v643
        %v838 = vpop.f32.mrf.mxu0
        %v839 = vadd.f32 0.0, %v838
        %840 = vmatmul.f32.gmra.mxu0 %v644
        %v841 = vpop.f32.mrf.mxu0
        %v842 = vadd.f32 0.0, %v841
        %843 = vmatmul.f32.gmra.mxu0 %v645
        %v844 = vpop.f32.mrf.mxu0
        %v845 = vadd.f32 0.0, %v844
        %846 = vmatmul.f32.gmra.mxu0 %v646
        %v847 = vpop.f32.mrf.mxu0
        %v848 = vadd.f32 0.0, %v847
        %849 = vmatmul.f32.gmra.mxu0 %v647
        %v850 = vpop.f32.mrf.mxu0
        %v851 = vadd.f32 0.0, %v850
        %852 = vmatmul.f32.gmra.mxu0 %v648
        %v853 = vpop.f32.mrf.mxu0
        %v854 = vadd.f32 0.0, %v853
        %855 = vmatmul.f32.gmra.mxu0 %v649
        %v856 = vpop.f32.mrf.mxu0
        %v857 = vadd.f32 0.0, %v856
        %858 = vmatmul.f32.gmra.mxu0 %v650
        %v859 = vpop.f32.mrf.mxu0
        %v860 = vadd.f32 0.0, %v859
        %861 = vmatmul.f32.gmra.mxu0 %v651
        %v862 = vpop.f32.mrf.mxu0
        %v863 = vadd.f32 0.0, %v862
        %864 = vmatmul.f32.gmra.mxu0 %v652
        %v865 = vpop.f32.mrf.mxu0
        %v866 = vadd.f32 0.0, %v865
        %867 = vmatmul.f32.gmra.mxu0 %v653
        %v868 = vpop.f32.mrf.mxu0
        %v869 = vadd.f32 0.0, %v868
        %870 = vmatmul.f32.gmra.mxu0 %v654
        %v871 = vpop.f32.mrf.mxu0
        %v872 = vadd.f32 0.0, %v871
        %873 = vmatmul.f32.gmra.mxu0 %v655
        %v874 = vpop.f32.mrf.mxu0
        %v875 = vadd.f32 0.0, %v874
        %876 = vmatmul.f32.gmra.mxu0 %v656
        %v877 = vpop.f32.mrf.mxu0
        %v878 = vadd.f32 0.0, %v877
        %879 = vmatmul.f32.gmra.mxu0 %v657
        %v880 = vpop.f32.mrf.mxu0
        %v881 = vadd.f32 0.0, %v880
        %882 = vmatmul.f32.gmra.mxu0 %v658
        %v883 = vpop.f32.mrf.mxu0
        %v884 = vadd.f32 0.0, %v883
        %885 = vdwg.mxu0
        %886 = vmatpush.msra.mxu0 %v334
        %887 = vmatpush.msra.mxu0 %v332
        %888 = vmatpush.msra.mxu0 %v330
        %889 = vmatpush.msra.mxu0 %v328
        %890 = vmatpush.msra.mxu0 %v326
        %891 = vmatpush.msra.mxu0 %v324
        %892 = vmatpush.msra.mxu0 %v322
        %893 = vmatpush.msra.mxu0 %v320
        %894 = vmatpush.msra.mxu0 %v318
        %895 = vmatpush.msra.mxu0 %v316
        %896 = vmatpush.msra.mxu0 %v314
        %897 = vmatpush.msra.mxu0 %v312
        %898 = vmatpush.msra.mxu0 %v310
        %899 = vmatpush.msra.mxu0 %v308
        %900 = vmatpush.msra.mxu0 %v306
        %901 = vmatpush.msra.mxu0 %v304
        %902 = vmatmul.f32.gmra.mxu0 %v675
        %v903 = vpop.f32.mrf.mxu0
        %v904 = vadd.f32 %v839, %v903
        %905 = vmatmul.f32.gmra.mxu0 %v676
        %v906 = vpop.f32.mrf.mxu0
        %v907 = vadd.f32 %v842, %v906
        %908 = vmatmul.f32.gmra.mxu0 %v677
        %v909 = vpop.f32.mrf.mxu0
        %v910 = vadd.f32 %v845, %v909
        %911 = vmatmul.f32.gmra.mxu0 %v678
        %v912 = vpop.f32.mrf.mxu0
        %v913 = vadd.f32 %v848, %v912
        %914 = vmatmul.f32.gmra.mxu0 %v679
        %v915 = vpop.f32.mrf.mxu0
        %v916 = vadd.f32 %v851, %v915
        %917 = vmatmul.f32.gmra.mxu0 %v680
        %v918 = vpop.f32.mrf.mxu0
        %v919 = vadd.f32 %v854, %v918
        %920 = vmatmul.f32.gmra.mxu0 %v681
        %v921 = vpop.f32.mrf.mxu0
        %v922 = vadd.f32 %v857, %v921
        %923 = vmatmul.f32.gmra.mxu0 %v682
        %v924 = vpop.f32.mrf.mxu0
        %v925 = vadd.f32 %v860, %v924
        %926 = vmatmul.f32.gmra.mxu0 %v683
        %v927 = vpop.f32.mrf.mxu0
        %v928 = vadd.f32 %v863, %v927
        %929 = vmatmul.f32.gmra.mxu0 %v684
        %v930 = vpop.f32.mrf.mxu0
        %v931 = vadd.f32 %v866, %v930
        %932 = vmatmul.f32.gmra.mxu0 %v685
        %v933 = vpop.f32.mrf.mxu0
        %v934 = vadd.f32 %v869, %v933
        %935 = vmatmul.f32.gmra.mxu0 %v686
        %v936 = vpop.f32.mrf.mxu0
        %v937 = vadd.f32 %v872, %v936
        %938 = vmatmul.f32.gmra.mxu0 %v687
        %v939 = vpop.f32.mrf.mxu0
        %v940 = vadd.f32 %v875, %v939
        %941 = vmatmul.f32.gmra.mxu0 %v688
        %v942 = vpop.f32.mrf.mxu0
        %v943 = vadd.f32 %v878, %v942
        %944 = vmatmul.f32.gmra.mxu0 %v689
        %v945 = vpop.f32.mrf.mxu0
        %v946 = vadd.f32 %v881, %v945
        %947 = vmatmul.f32.gmra.mxu0 %v690
        %v948 = vpop.f32.mrf.mxu0
        %v949 = vadd.f32 %v884, %v948
        %950 = vdwg.mxu0
        %s951 = smul.u32 %s25, 32
        %s952 = smul.addr %s951, 8
        %s953 = scalar_lea.vmem %s2, %s952
        %v954 = vld [vmem:[%s953] sm:$0xff]
        %v955 = vld [vmem:[%s953 + $0x8] sm:$0xff]
        %v956 = vld [vmem:[%s953 + $0x10] sm:$0xff]
        %v957 = vld [vmem:[%s953 + $0x18] sm:$0xff]
        %v958 = vld [vmem:[%s953 + $0x20] sm:$0xff]
        %v959 = vld [vmem:[%s953 + $0x28] sm:$0xff]
        %v960 = vld [vmem:[%s953 + $0x30] sm:$0xff]
        %v961 = vld [vmem:[%s953 + $0x38] sm:$0xff]
        %v962 = vld [vmem:[%s953 + $0x40] sm:$0xff]
        %v963 = vld [vmem:[%s953 + $0x48] sm:$0xff]
        %v964 = vld [vmem:[%s953 + $0x50] sm:$0xff]
        %v965 = vld [vmem:[%s953 + $0x58] sm:$0xff]
        %v966 = vld [vmem:[%s953 + $0x60] sm:$0xff]
        %v967 = vld [vmem:[%s953 + $0x68] sm:$0xff]
        %v968 = vld [vmem:[%s953 + $0x70] sm:$0xff]
        %v969 = vld [vmem:[%s953 + $0x78] sm:$0xff]
        %v970 = vld [vmem:[%s953 + $0x80] sm:$0xff]
        %v971 = vld [vmem:[%s953 + $0x88] sm:$0xff]
        %v972 = vld [vmem:[%s953 + $0x90] sm:$0xff]
        %v973 = vld [vmem:[%s953 + $0x98] sm:$0xff]
        %v974 = vld [vmem:[%s953 + $0xa0] sm:$0xff]
        %v975 = vld [vmem:[%s953 + $0xa8] sm:$0xff]
        %v976 = vld [vmem:[%s953 + $0xb0] sm:$0xff]
        %v977 = vld [vmem:[%s953 + $0xb8] sm:$0xff]
        %v978 = vld [vmem:[%s953 + $0xc0] sm:$0xff]
        %v979 = vld [vmem:[%s953 + $0xc8] sm:$0xff]
        %v980 = vld [vmem:[%s953 + $0xd0] sm:$0xff]
        %v981 = vld [vmem:[%s953 + $0xd8] sm:$0xff]
        %v982 = vld [vmem:[%s953 + $0xe0] sm:$0xff]
        %v983 = vld [vmem:[%s953 + $0xe8] sm:$0xff]
        %v984 = vld [vmem:[%s953 + $0xf0] sm:$0xff]
        %v985 = vld [vmem:[%s953 + $0xf8] sm:$0xff]
        %v986 = vmul.f32 %v774, %v954
        %v987 = vmul.f32 %v777, %v956
        %v988 = vmul.f32 %v780, %v958
        %v989 = vmul.f32 %v783, %v960
        %v990 = vmul.f32 %v786, %v962
        %v991 = vmul.f32 %v789, %v964
        %v992 = vmul.f32 %v792, %v966
        %v993 = vmul.f32 %v795, %v968
        %v994 = vmul.f32 %v798, %v970
        %v995 = vmul.f32 %v801, %v972
        %v996 = vmul.f32 %v804, %v974
        %v997 = vmul.f32 %v807, %v976
        %v998 = vmul.f32 %v810, %v978
        %v999 = vmul.f32 %v813, %v980
        %v1000 = vmul.f32 %v816, %v982
        %v1001 = vmul.f32 %v819, %v984
        %v1002 = vmul.f32 %v904, %v955
        %v1003 = vmul.f32 %v907, %v957
        %v1004 = vmul.f32 %v910, %v959
        %v1005 = vmul.f32 %v913, %v961
        %v1006 = vmul.f32 %v916, %v963
        %v1007 = vmul.f32 %v919, %v965
        %v1008 = vmul.f32 %v922, %v967
        %v1009 = vmul.f32 %v925, %v969
        %v1010 = vmul.f32 %v928, %v971
        %v1011 = vmul.f32 %v931, %v973
        %v1012 = vmul.f32 %v934, %v975
        %v1013 = vmul.f32 %v937, %v977
        %v1014 = vmul.f32 %v940, %v979
        %v1015 = vmul.f32 %v943, %v981
        %v1016 = vmul.f32 %v946, %v983
        %v1017 = vmul.f32 %v949, %v985
        %v1018 = vsub.f32 %v986, %v1002
        %v1019 = vsub.f32 %v987, %v1003
        %v1020 = vsub.f32 %v988, %v1004
        %v1021 = vsub.f32 %v989, %v1005
        %v1022 = vsub.f32 %v990, %v1006
        %v1023 = vsub.f32 %v991, %v1007
        %v1024 = vsub.f32 %v992, %v1008
        %v1025 = vsub.f32 %v993, %v1009
        %v1026 = vsub.f32 %v994, %v1010
        %v1027 = vsub.f32 %v995, %v1011
        %v1028 = vsub.f32 %v996, %v1012
        %v1029 = vsub.f32 %v997, %v1013
        %v1030 = vsub.f32 %v998, %v1014
        %v1031 = vsub.f32 %v999, %v1015
        %v1032 = vsub.f32 %v1000, %v1016
        %v1033 = vsub.f32 %v1001, %v1017
        %v1034 = vmul.f32 %v774, %v955
        %v1035 = vmul.f32 %v777, %v957
        %v1036 = vmul.f32 %v780, %v959
        %v1037 = vmul.f32 %v783, %v961
        %v1038 = vmul.f32 %v786, %v963
        %v1039 = vmul.f32 %v789, %v965
        %v1040 = vmul.f32 %v792, %v967
        %v1041 = vmul.f32 %v795, %v969
        %v1042 = vmul.f32 %v798, %v971
        %v1043 = vmul.f32 %v801, %v973
        %v1044 = vmul.f32 %v804, %v975
        %v1045 = vmul.f32 %v807, %v977
        %v1046 = vmul.f32 %v810, %v979
        %v1047 = vmul.f32 %v813, %v981
        %v1048 = vmul.f32 %v816, %v983
        %v1049 = vmul.f32 %v819, %v985
        %v1050 = vmul.f32 %v904, %v954
        %v1051 = vmul.f32 %v907, %v956
        %v1052 = vmul.f32 %v910, %v958
        %v1053 = vmul.f32 %v913, %v960
        %v1054 = vmul.f32 %v916, %v962
        %v1055 = vmul.f32 %v919, %v964
        %v1056 = vmul.f32 %v922, %v966
        %v1057 = vmul.f32 %v925, %v968
        %v1058 = vmul.f32 %v928, %v970
        %v1059 = vmul.f32 %v931, %v972
        %v1060 = vmul.f32 %v934, %v974
        %v1061 = vmul.f32 %v937, %v976
        %v1062 = vmul.f32 %v940, %v978
        %v1063 = vmul.f32 %v943, %v980
        %v1064 = vmul.f32 %v946, %v982
        %v1065 = vmul.f32 %v949, %v984
        %v1066 = vadd.f32 %v1034, %v1050
        %v1067 = vadd.f32 %v1035, %v1051
        %v1068 = vadd.f32 %v1036, %v1052
        %v1069 = vadd.f32 %v1037, %v1053
        %v1070 = vadd.f32 %v1038, %v1054
        %v1071 = vadd.f32 %v1039, %v1055
        %v1072 = vadd.f32 %v1040, %v1056
        %v1073 = vadd.f32 %v1041, %v1057
        %v1074 = vadd.f32 %v1042, %v1058
        %v1075 = vadd.f32 %v1043, %v1059
        %v1076 = vadd.f32 %v1044, %v1060
        %v1077 = vadd.f32 %v1045, %v1061
        %v1078 = vadd.f32 %v1046, %v1062
        %v1079 = vadd.f32 %v1047, %v1063
        %v1080 = vadd.f32 %v1048, %v1064
        %v1081 = vadd.f32 %v1049, %v1065
        %1082 = vst [vmem:[%s202] sm:$0xff] %v1018
        %1083 = vst [vmem:[%s202 + $0x8] sm:$0xff] %v1066
        %1084 = vst [vmem:[%s202 + $0x10] sm:$0xff] %v1019
        %1085 = vst [vmem:[%s202 + $0x18] sm:$0xff] %v1067
        %1086 = vst [vmem:[%s202 + $0x20] sm:$0xff] %v1020
        %1087 = vst [vmem:[%s202 + $0x28] sm:$0xff] %v1068
        %1088 = vst [vmem:[%s202 + $0x30] sm:$0xff] %v1021
        %1089 = vst [vmem:[%s202 + $0x38] sm:$0xff] %v1069
        %1090 = vst [vmem:[%s202 + $0x40] sm:$0xff] %v1022
        %1091 = vst [vmem:[%s202 + $0x48] sm:$0xff] %v1070
        %1092 = vst [vmem:[%s202 + $0x50] sm:$0xff] %v1023
        %1093 = vst [vmem:[%s202 + $0x58] sm:$0xff] %v1071
        %1094 = vst [vmem:[%s202 + $0x60] sm:$0xff] %v1024
        %1095 = vst [vmem:[%s202 + $0x68] sm:$0xff] %v1072
        %1096 = vst [vmem:[%s202 + $0x70] sm:$0xff] %v1025
        %1097 = vst [vmem:[%s202 + $0x78] sm:$0xff] %v1073
        %1098 = vst [vmem:[%s202 + $0x80] sm:$0xff] %v1026
        %1099 = vst [vmem:[%s202 + $0x88] sm:$0xff] %v1074
        %1100 = vst [vmem:[%s202 + $0x90] sm:$0xff] %v1027
        %1101 = vst [vmem:[%s202 + $0x98] sm:$0xff] %v1075
        %1102 = vst [vmem:[%s202 + $0xa0] sm:$0xff] %v1028
        %1103 = vst [vmem:[%s202 + $0xa8] sm:$0xff] %v1076
        %1104 = vst [vmem:[%s202 + $0xb0] sm:$0xff] %v1029
        %1105 = vst [vmem:[%s202 + $0xb8] sm:$0xff] %v1077
        %1106 = vst [vmem:[%s202 + $0xc0] sm:$0xff] %v1030
        %1107 = vst [vmem:[%s202 + $0xc8] sm:$0xff] %v1078
        %1108 = vst [vmem:[%s202 + $0xd0] sm:$0xff] %v1031
        %1109 = vst [vmem:[%s202 + $0xd8] sm:$0xff] %v1079
        %1110 = vst [vmem:[%s202 + $0xe0] sm:$0xff] %v1032
        %1111 = vst [vmem:[%s202 + $0xe8] sm:$0xff] %v1080
        %1112 = vst [vmem:[%s202 + $0xf0] sm:$0xff] %v1033
        %1113 = vst [vmem:[%s202 + $0xf8] sm:$0xff] %v1081
        %s1114 = sand.u32 %s108, 1
        %s1115 = scalar_lea.sflag [#allocation4], %s1114
        %s1116 = sand.u32 %s108, 1
        %s1117 = smul.addr %s1116, 256
        %s1118 = scalar_lea.vmem [#allocation5], %s1117
        // Predicated region
        $region41: #{tpu_custom_call.1} parent=31 // pred_check
          %p1119 = pneg %p118
        $region42: #{tpu_custom_call.1} parent=31 // pred_check_branch
          %1121 = sbr.rel (%p1119) target = $region44
        $region43: #{tpu_custom_call.1} parent=31 // pred_region
          %1123 = vsyncadd %s1115, 0
          %s1124 = smul.addr %s24, 32
          %s1125 = smul.addr %s1124, 8
          %s1126 = scalar_lea.hbm %s3, %s1125
          %s1127 = sshll.u32 %s1118, 4
          %s1128 = int_to_ptr.vmem [resolvable:$true] %s1127
          %s1129 = sshll.u32 %s1126, 4
          %s1130 = int_to_ptr.hbm [resolvable:$true] %s1129
          %1135 = dma.vmem_to_hbm [thread:$0]  %s1128, 4096, %s1130, %s1115, 256, 256, 16
        $region44: #{tpu_custom_call.1} parent=31 // pred_fallthru
          _
      $region32: #{tpu_custom_call.1} parent=5 // pred_fallthru
        _
      %p1136 = scmp.le.s32.totalorder 2, %s15
      // Predicated region
      $region45: #{tpu_custom_call.1} parent=5 // pred_check
        %p1137 = pneg %p1136
      $region46: #{tpu_custom_call.1} parent=5 // pred_check_branch
        %1139 = sbr.rel (%p1137) target = $region48
      $region47: #{tpu_custom_call.1} parent=5 // pred_region
        %s1140 = ssub.s32 %s15, 2
        // Predicated region
        $region49: #{tpu_custom_call.1} parent=47 // pred_check
          %p1141 = pneg %p124
        $region50: #{tpu_custom_call.1} parent=47 // pred_check_branch
          %1143 = sbr.rel (%p1141) target = $region52
        $region51: #{tpu_custom_call.1} parent=47 // pred_region
          %s1144 = sand.u32 %s109, 1
          %s1145 = scalar_lea.sflag [#allocation4], %s1144
          %s1146 = sand.u32 %s109, 1
          %s1147 = smul.addr %s1146, 256
          %s1148 = scalar_lea.vmem [#allocation5], %s1147
          %1150 = dma.done %s1145, 4096
        $region52: #{tpu_custom_call.1} parent=47 // pred_fallthru
          _
      $region48: #{tpu_custom_call.1} parent=5 // pred_fallthru
        _
    $region6: #{tpu_custom_call.1} parent=1 // loop_footer
      %s19 = sadd.s32 1, %s15
    $region7: #{tpu_custom_call.1} parent=1 // loop_footer_branch
      %14 = sbr.rel target = $region3
    $region8: #{tpu_custom_call.1} parent=1 // loop_exit
      _
    %1151 = vsyncpa [#allocation3], 1
    %s1152 = scalar_lea.sflag [#allocation3], 1
    %1153 = vsyncpa %s1152, 1
    %1154 = vsyncpa [#allocation4], 1
    %s1155 = scalar_lea.sflag [#allocation4], 1
    %1156 = vsyncpa %s1155, 1

</llo_original>
